<compile_context>
chip_gen: v7x
topology: tpu7x:2x2x1
jax: 0.10.0
libtpu: 0.0.40
codegen_flags: <defaults>
</compile_context>

<pallas_src>
import jax
import jax.numpy as jnp
from jax.experimental import pallas as pl
from jax.experimental.pallas import tpu as pltpu


def _round_up(x, m):
    return ((x + m - 1) // m) * m


def gnn_kernel_fused(sup_ref, p_ref, out_ref):
    # sup_ref: (tm, n_k) f32 row slab (streamed per grid step).
    # p_ref:   (n_k, d_pad) f32, VMEM-resident (constant index_map -> DMA'd once).
    # out_ref: (tm, d_pad).
    h = jnp.dot(sup_ref[...], p_ref[...], preferred_element_type=jnp.float32)
    h = jnp.maximum(h, 0.0)
    # Row-wise L2 normalize; padded columns are exactly zero so they do not
    # perturb the norm.  1/max(norm, eps) == rsqrt(max(sumsq, eps^2)).
    sumsq = jnp.sum(h * h, axis=1, keepdims=True)
    inv = jax.lax.rsqrt(jnp.maximum(sumsq, 1e-24))
    out_ref[...] = (h * inv).astype(out_ref.dtype)


def gnn_kernel_acc(sup_ref, p_ref, out_ref, acc_ref):
    # Fallback (huge N): sup tiled (tm, tk), P tiled (tk, d_pad), f32 acc.
    # The contraction axis MUST stay the last (innermost) grid axis.
    k = pl.program_id(1)

    @pl.when(k == 0)
    def _():
        acc_ref[...] = jnp.zeros_like(acc_ref)

    acc_ref[...] += jnp.dot(
        sup_ref[...], p_ref[...], preferred_element_type=jnp.float32
    )

    @pl.when(k == pl.num_programs(1) - 1)
    def _():
        h = jnp.maximum(acc_ref[...], 0.0)
        sumsq = jnp.sum(h * h, axis=1, keepdims=True)
        inv = jax.lax.rsqrt(jnp.maximum(sumsq, 1e-24))
        out_ref[...] = (h * inv).astype(out_ref.dtype)


def gnn_forward(feat, sup, weight, *, vmem_budget_bytes=24 * 1024 * 1024):
    """feat: (N, D_in), sup: (N, N) dense normalized adjacency,
    weight: (D_in, D_out). Returns (N, D_out) in feat.dtype."""
    N, _ = feat.shape
    d_out = weight.shape[1]
    out_dtype = feat.dtype
    fsize = 4  # f32 bytes
    osize = jnp.dtype(out_dtype).itemsize
    vmem_limit = 32 * 1024 * 1024  # explicit; safe on v5e/v6e/v7x

    # Reassociation: sup @ (feat @ W) == (sup @ feat) @ W.  P is tiny.
    p = jnp.dot(
        feat.astype(jnp.float32),
        weight.astype(jnp.float32),
        precision=jax.lax.Precision.HIGHEST,
    )

    d_pad = _round_up(d_out, 128)      # lane-dense output stores
    n128 = _round_up(N, 128)

    # ---- Primary path: collapsed contraction, P resident in VMEM. ----------
    # Footprint(tm): sup slab double-buffered + P (budget 2 bufs) + out dbuf.
    p_bytes = 2 * n128 * d_pad * fsize
    def _slab_bytes(tm):
        return 2 * tm * n128 * fsize + 2 * tm * d_pad * osize

    if p_bytes + _slab_bytes(128) <= vmem_budget_bytes:
        # Largest tm (multiple of 128) within budget, capped so the row axis
        # keeps several "parallel" tiles (lets v7x shard across its 2 TCs).
        tm_budget = ((vmem_budget_bytes - p_bytes)
                     // (2 * (n128 * fsize + d_pad * osize)) // 128) * 128
        tm_cap = max(128, ((n128 // 8) // 128) * 128)
        tm = max(128, min(tm_budget, tm_cap))
        n_m = _round_up(N, tm)
        n_k = n128

        sup_p = sup.astype(jnp.float32)
        if (n_m, n_k) != (N, N):   # pad only when unaligned; axes independent
            sup_p = jnp.pad(sup_p, ((0, n_m - N), (0, n_k - N)))
        p_p = jnp.pad(p, ((0, n_k - N), (0, d_pad - d_out)))

        grid = (n_m // tm,)
        out = pl.pallas_call(
            gnn_kernel_fused,
            out_shape=jax.ShapeDtypeStruct((n_m, d_pad), out_dtype),
            grid_spec=pltpu.PrefetchScalarGridSpec(
                num_scalar_prefetch=0,
                grid=grid,
                in_specs=[
                    pl.BlockSpec((tm, n_k), lambda i: (i, 0)),
                    # Constant index_map + full extent -> DMA'd once, resident.
                    pl.BlockSpec((n_k, d_pad), lambda i: (0, 0)),
                ],
                out_specs=pl.BlockSpec((tm, d_pad), lambda i: (i, 0)),
            ),
            compiler_params=pltpu.CompilerParams(
                dimension_semantics=("parallel",),
                vmem_limit_bytes=vmem_limit,
            ),
            cost_estimate=pl.CostEstimate(
                flops=2 * n_m * n_k * d_pad,
                bytes_accessed=(n_m * n_k * fsize      # sup, read once
                                + n_k * d_pad * fsize  # P, read once
                                + n_m * d_pad * osize),
                transcendentals=n_m,
            ),
        )(sup_p, p_p)
        return out[:N, :d_out]

    # ---- Fallback path: contraction-tiled grid (very large N). -------------
    tm = 256
    fixed = 2 * tm * d_pad * osize + tm * d_pad * fsize
    tk_budget = (vmem_budget_bytes - fixed) // (2 * fsize * (tm + d_pad))
    tk = max(128, min(2048, (tk_budget // 128) * 128))
    n_m = _round_up(N, tm)
    n_k = _round_up(N, tk)

    sup_p = jnp.pad(sup.astype(jnp.float32), ((0, n_m - N), (0, n_k - N)))
    p_p = jnp.pad(p, ((0, n_k - N), (0, d_pad - d_out)))

    grid = (n_m // tm, n_k // tk)
    out = pl.pallas_call(
        gnn_kernel_acc,
        out_shape=jax.ShapeDtypeStruct((n_m, d_pad), out_dtype),
        grid_spec=pltpu.PrefetchScalarGridSpec(
            num_scalar_prefetch=0,
            grid=grid,
            in_specs=[
                pl.BlockSpec((tm, tk), lambda i, k: (i, k)),
                pl.BlockSpec((tk, d_pad), lambda i, k: (k, 0)),
            ],
            out_specs=pl.BlockSpec((tm, d_pad), lambda i, k: (i, 0)),
            scratch_shapes=[pltpu.VMEM((tm, d_pad), jnp.float32)],
        ),
        compiler_params=pltpu.CompilerParams(
            dimension_semantics=("parallel", "arbitrary"),
            vmem_limit_bytes=vmem_limit,
        ),
        cost_estimate=pl.CostEstimate(
            flops=2 * n_m * n_k * d_pad,
            bytes_accessed=(n_m * n_k * fsize
                            + grid[0] * n_k * d_pad * fsize
                            + n_m * d_pad * osize),
            transcendentals=n_m,
        ),
    )(sup_p, p_p)
    return out[:N, :d_out]


def xavier_uniform(key, fan_in, fan_out, dtype=jnp.float32):
    bound = (6.0 / (fan_in + fan_out)) ** 0.5
    return jax.random.uniform(key, (fan_in, fan_out), dtype=dtype,
                              minval=-bound, maxval=bound)


if __name__ == "__main__":
    # Small shapes consistent with the module: N nodes, input_dim, output_dim.
    N, INPUT_DIM, OUTPUT_DIM = 256, 64, 32

    key = jax.random.PRNGKey(0)
    k_feat, k_adj, k_w = jax.random.split(key, 3)

    feat = jax.random.normal(k_feat, (N, INPUT_DIM), dtype=jnp.float32)

    # Synthetic normalized adjacency: D^-1/2 (A + I) D^-1/2.
    a = jax.random.uniform(k_adj, (N, N), dtype=jnp.float32)
    a = 0.5 * (a + a.T) + jnp.eye(N, dtype=jnp.float32)
    deg = jnp.sum(a, axis=1, keepdims=True)
    sup = a / jnp.sqrt(deg) / jnp.sqrt(deg.T)

    # Parameter: xavier_uniform(input_dim, output_dim).
    agg_wei = xavier_uniform(k_w, INPUT_DIM, OUTPUT_DIM)

    out = gnn_forward(feat, sup, agg_wei)
    out = jax.block_until_ready(out)

    # Plain-JAX f32 reference (same math as the PyTorch forward).
    ref = jnp.maximum(
        jnp.dot(jnp.dot(sup, feat, precision=jax.lax.Precision.HIGHEST),
                agg_wei, precision=jax.lax.Precision.HIGHEST),
        0.0,
    )
    ref = ref / jnp.maximum(
        jnp.sqrt(jnp.sum(ref * ref, axis=1, keepdims=True)), 1e-12)

    assert out.shape == (N, OUTPUT_DIM)
    max_err = float(jnp.max(jnp.abs(out - ref)))
    assert jnp.allclose(out, ref, atol=1e-2, rtol=1e-2), f"mismatch: {max_err}"

    print("KERNEL_OK")
</pallas_src>

<mosaic_0001>
module attributes {stable_mosaic.version = 11 : i64} {
  func.func @gnn_kernel_fused(%arg0: i32, %arg1: memref<128x256xf32, #tpu.memory_space<vmem>>, %arg2: memref<256x128xf32, #tpu.memory_space<vmem>>, %arg3: memref<128x128xf32, #tpu.memory_space<vmem>>) attributes {dimension_semantics = [#tpu.dimension_semantics<parallel>], iteration_bounds = array<i64: 2>, scalar_prefetch = 0 : i64, scratch_operands = 0 : i64, tpu.core_type = #tpu.core_type<tc>, window_params = [{transform_indices = @transform_0, window_bounds = array<i64: 128, 256>}, {pipeline_mode = #tpu.pipeline_mode<synchronous>, transform_indices = @transform_1, window_bounds = array<i64: 256, 128>}, {transform_indices = @transform_2, window_bounds = array<i64: 128, 128>}]} {
    %c0 = arith.constant 0 : index
    %c0_0 = arith.constant 0 : index
    %0 = vector.load %arg1[%c0, %c0_0] : memref<128x256xf32, #tpu.memory_space<vmem>>, vector<128x256xf32>
    %c0_1 = arith.constant 0 : index
    %c0_2 = arith.constant 0 : index
    %1 = vector.load %arg2[%c0_1, %c0_2] : memref<256x128xf32, #tpu.memory_space<vmem>>, vector<256x128xf32>
    %cst = arith.constant dense<0.000000e+00> : vector<128x128xf32>
    %2 = tpu.matmul %0, %1, %cst {dimension_numbers = #tpu.dot_dimension_numbers<[1], [0], [0], [1], [0, 0, 1, 1], [], []>} : vector<128x256xf32>, vector<256x128xf32>, vector<128x128xf32> -> vector<128x128xf32>
    %cst_3 = arith.constant 0.000000e+00 : f32
    %3 = vector.broadcast %cst_3 : f32 to vector<128x128xf32>
    %4 = arith.maximumf %2, %3 : vector<128x128xf32>
    %5 = arith.mulf %4, %4 : vector<128x128xf32>
    %cst_4 = arith.constant dense<0.000000e+00> : vector<128xf32>
    %6 = vector.multi_reduction <add>, %5, %cst_4 [1] : vector<128x128xf32> to vector<128xf32>
    %7 = vector.shape_cast %6 : vector<128xf32> to vector<128x1xf32>
    %cst_5 = arith.constant 1.000000e-24 : f32
    %8 = vector.broadcast %cst_5 : f32 to vector<128x1xf32>
    %9 = arith.maximumf %7, %8 : vector<128x1xf32>
    %10 = math.rsqrt %9 : vector<128x1xf32>
    %11 = vector.broadcast %10 : vector<128x1xf32> to vector<128x128xf32>
    %12 = arith.mulf %4, %11 : vector<128x128xf32>
    %c0_6 = arith.constant 0 : index
    %c0_7 = arith.constant 0 : index
    %13 = vector.load %arg3[%c0_6, %c0_7] : memref<128x128xf32, #tpu.memory_space<vmem>>, vector<128x128xf32>
    tpu.vector_store %arg3[%c0_6, %c0_7], %12 {strides = array<i32>} : memref<128x128xf32, #tpu.memory_space<vmem>>, vector<128x128xf32>,
    return
  }
  func.func @transform_0(%arg0: i32) -> (i32, i32) {
    %c0_i32 = arith.constant 0 : i32
    %c0_i32_0 = arith.constant 0 : i32
    return %arg0, %c0_i32 : i32, i32
  }
  func.func @transform_1(%arg0: i32) -> (i32, i32) {
    %c0_i32 = arith.constant 0 : i32
    %c0_i32_0 = arith.constant 0 : i32
    %c0_i32_1 = arith.constant 0 : i32
    return %c0_i32, %c0_i32_0 : i32, i32
  }
  func.func @transform_2(%arg0: i32) -> (i32, i32) {
    %c0_i32 = arith.constant 0 : i32
    %c0_i32_0 = arith.constant 0 : i32
    return %arg0, %c0_i32 : i32, i32
  }
}

</mosaic_0001>

<llo_original>
// kernel: tpu_custom_call.1
$region0: #{tpu_custom_call.1}
  #allocation0 [shape = 'u32[]', space=smem, size = 0x4, offset = 0x4, fixed_abs, tag = 'smem constant byte address 0x4 - core index']
  #allocation1 [shape = 'u32[144,128]{1,0:T(1,128)}', space=vmem, size = 0x12000, scoped, tag = 'internal scratch']
  %s0 = inlined_call_operand.hbm [shape: f32[256,256], index: 0, kind: input, shape index: {}]
  %s1 = inlined_call_operand.hbm [shape: f32[256,128], index: 1, kind: input, shape index: {}]
  %s2 = inlined_call_operand.hbm [shape: f32[256,128], index: 2, kind: output, shape index: {}]
  %s3 = sld [smem:[#allocation0]]
  $region49: #{tpu_custom_call.1} parent=0
    _
  %s5 = ssub.s32 1, %s3
  %s6 = scalar_select 0, %s5, %s3
  $region1: #{tpu_custom_call.1} parent=0
    #allocation2 [shape = 'u8[262144]{0}', space=vmem, size = 0x40000, scoped, tag = 'input window, operand 0']
    #allocation3 [shape = 's32[2]{0}', space=sflag, size = 0x8, scoped, tag = 'scoped memory for tpu_custom_call.1']
    #allocation4 [shape = 's32[2]{0}', space=sflag, size = 0x8, scoped, tag = 'scoped memory for tpu_custom_call.1']
    #allocation5 [shape = 'u8[131072]{0}', space=vmem, size = 0x20000, scoped, tag = 'input window, operand 1, single buffered']
    #allocation6 [shape = 's32[1]{0}', space=sflag, size = 0x4, scoped, tag = 'scoped memory for tpu_custom_call.1']
    #allocation7 [shape = 'u8[131072]{0}', space=vmem, size = 0x20000, scoped, tag = 'output window, operand 0']
    %7 = vsyncpa [#allocation3], 0
    %s8 = scalar_lea.sflag [#allocation3], 1
    %9 = vsyncpa %s8, 0
    %10 = vsyncpa [#allocation6], 0
    %11 = vsyncpa [#allocation4], 0
    %s12 = scalar_lea.sflag [#allocation4], 1
    %13 = vsyncpa %s12, 0
    loop: start=0, step=1, limit=4
    $region2: #{tpu_custom_call.1} parent=1 // loop_pre_header
      _
    $region3: #{tpu_custom_call.1} parent=1 // loop_header
      %s15 = sphi 0, %s19
      %p16 = scmp.ge.s32.totalorder %s15, 4
      %s25 = sphi 0, %s27
      %s28 = sphi 0, %s25
      %s29 = sphi 0, %s28
      %s45 = sphi 0, %s29
      %s49 = sphi 0, %s49
      %s51 = sphi 0, %s49
      %s52 = sphi 0, %s51
      %s66 = sphi 0, %s52
      %s72 = sphi 0, %s74
      %s75 = sphi 0, %s72
      %s76 = sphi 0, %s75
      %s92 = sphi 0, %s76
    $region4: #{tpu_custom_call.1} parent=1 // loop_header_branch
      %18 = sbr.rel (%p16) target = $region8
    $region5: #{tpu_custom_call.1} parent=1 // loop_body
      %s20 = ssub.s32 %s15, 1
      %s21 = ssub.s32 %s15, 2
      %s22 = sadd.s32 %s15, 1
      %s23 = ssub.s32 %s15, %s22
      %p24 = scmp.eq.s32.totalorder %s23, 0
      %s26 = sadd.s32 %s25, 1
      %s27 = scalar_select %p24, %s25, %s26
      %p30 = pneg %p24
      %p31 = scmp.eq.s32.totalorder %s15, 1
      %p32 = por %p30, %p31
      %p33 = scmp.ne.s32.totalorder %s25, %s28
      %p34 = scmp.eq.s32.totalorder %s15, 0
      %p35 = por %p33, %p34
      %p36 = scmp.ne.s32.totalorder %s25, %s28
      %p37 = scmp.eq.s32.totalorder %s20, 1
      %p38 = por %p36, %p37
      %p39 = scmp.ne.s32.totalorder %s28, %s29
      %p40 = scmp.eq.s32.totalorder %s20, 0
      %p41 = por %p39, %p40
      %p42 = scmp.ne.s32.totalorder %s28, %s29
      %p43 = scmp.eq.s32.totalorder %s21, 1
      %p44 = por %p42, %p43
      %p46 = scmp.ne.s32.totalorder %s29, %s45
      %p47 = scmp.eq.s32.totalorder %s21, 0
      %p48 = por %p46, %p47
      %s50 = sadd.s32 %s49, 1
      %p53 = scmp.eq.s32.totalorder %s15, 1
      %p54 = scmp.ne.s32.totalorder %s49, %s51
      %p55 = scmp.eq.s32.totalorder %s15, 0
      %p56 = por %p54, %p55
      %p57 = scmp.ne.s32.totalorder %s49, %s51
      %p58 = scmp.eq.s32.totalorder %s20, 1
      %p59 = por %p57, %p58
      %p60 = scmp.ne.s32.totalorder %s51, %s52
      %p61 = scmp.eq.s32.totalorder %s20, 0
      %p62 = por %p60, %p61
      %p63 = scmp.ne.s32.totalorder %s51, %s52
      %p64 = scmp.eq.s32.totalorder %s21, 1
      %p65 = por %p63, %p64
      %p67 = scmp.ne.s32.totalorder %s52, %s66
      %p68 = scmp.eq.s32.totalorder %s21, 0
      %p69 = por %p67, %p68
      %s70 = ssub.s32 %s15, %s22
      %p71 = scmp.eq.s32.totalorder %s70, 0
      %s73 = sadd.s32 %s72, 1
      %s74 = scalar_select %p71, %s72, %s73
      %p77 = pneg %p71
      %p78 = scmp.eq.s32.totalorder %s15, 1
      %p79 = por %p77, %p78
      %p80 = scmp.ne.s32.totalorder %s72, %s75
      %p81 = scmp.eq.s32.totalorder %s15, 0
      %p82 = por %p80, %p81
      %p83 = scmp.ne.s32.totalorder %s72, %s75
      %p84 = scmp.eq.s32.totalorder %s20, 1
      %p85 = por %p83, %p84
      %p86 = scmp.ne.s32.totalorder %s75, %s76
      %p87 = scmp.eq.s32.totalorder %s20, 0
      %p88 = por %p86, %p87
      %p89 = scmp.ne.s32.totalorder %s75, %s76
      %p90 = scmp.eq.s32.totalorder %s21, 1
      %p91 = por %p89, %p90
      %p93 = scmp.ne.s32.totalorder %s76, %s92
      %p94 = scmp.eq.s32.totalorder %s21, 0
      %p95 = por %p93, %p94
      %p96 = scmp.le.s32.totalorder 1, %s15
      %p97 = scmp.lt.s32.totalorder %s15, 3
      %p98 = pnand %p96, %p97
      %p99 = pneg %p98
      // Predicated region
      $region9: #{tpu_custom_call.1} parent=5 // pred_check
        _
      $region10: #{tpu_custom_call.1} parent=5 // pred_check_branch
        %101 = sbr.rel (%p98) target = $region12
      $region11: #{tpu_custom_call.1} parent=5 // pred_region
        %s102 = ssub.s32 %s15, 1
        // Predicated region
        $region13: #{tpu_custom_call.1} parent=11 // pred_check
          %p103 = pneg %p62
        $region14: #{tpu_custom_call.1} parent=11 // pred_check_branch
          %105 = sbr.rel (%p103) target = $region16
        $region15: #{tpu_custom_call.1} parent=11 // pred_region
          %s107 = ssub.s32 4096, 4096
          %108 = vsyncadd [#allocation6], %s107
          %s109 = sshll.u32 [#allocation5], 4
          %s110 = int_to_ptr.vmem [resolvable:$true] %s109
          %115 = dma.hbm_to_vmem [thread:$0]  %s1, 4096, %s110, [#allocation6], 128, 128, 8
        $region16: #{tpu_custom_call.1} parent=11 // pred_fallthru
          _
      $region12: #{tpu_custom_call.1} parent=5 // pred_fallthru
        _
      %p116 = scmp.lt.s32.totalorder %s15, 2
      // Predicated region
      $region17: #{tpu_custom_call.1} parent=5 // pred_check
        %p117 = pneg %p116
      $region18: #{tpu_custom_call.1} parent=5 // pred_check_branch
        %119 = sbr.rel (%p117) target = $region20
      $region19: #{tpu_custom_call.1} parent=5 // pred_region
        // Predicated region
        $region21: #{tpu_custom_call.1} parent=19 // pred_check
          %p120 = pneg %p35
        $region22: #{tpu_custom_call.1} parent=19 // pred_check_branch
          %122 = sbr.rel (%p120) target = $region24
        $region23: #{tpu_custom_call.1} parent=19 // pred_region
          %s123 = sand.u32 %s25, 1
          %s124 = scalar_lea.sflag [#allocation3], %s123
          %s125 = sand.u32 %s25, 1
          %s126 = smul.addr %s125, 256
          %s127 = scalar_lea.vmem [#allocation2], %s126
          %s128 = smul.u32 16, %s15
          %s130 = ssub.s32 4096, 4096
          %131 = vsyncadd %s124, %s130
          %s132 = smul.addr %s128, 2
          %s133 = smul.addr %s132, 128
          %s134 = scalar_lea.hbm %s0, %s133
          %s135 = sshll.u32 %s127, 4
          %s136 = int_to_ptr.vmem [resolvable:$true] %s135
          %141 = dma.hbm_to_vmem [thread:$0]  %s134, 4096, %s136, %s124, 256, 256, 16
        $region24: #{tpu_custom_call.1} parent=19 // pred_fallthru
          _
      $region20: #{tpu_custom_call.1} parent=5 // pred_fallthru
        _
      %p142 = scmp.le.s32.totalorder 1, %s15
      %p143 = scmp.lt.s32.totalorder %s15, 3
      %p144 = pnand %p142, %p143
      %p145 = pneg %p144
      // Predicated region
      $region25: #{tpu_custom_call.1} parent=5 // pred_check
        _
      $region26: #{tpu_custom_call.1} parent=5 // pred_check_branch
        %147 = sbr.rel (%p144) target = $region28
      $region27: #{tpu_custom_call.1} parent=5 // pred_region
        %s148 = ssub.s32 %s15, 1
        %s149 = sand.u32 %s28, 1
        %s150 = scalar_lea.sflag [#allocation3], %s149
        %s151 = sand.u32 %s28, 1
        %s152 = smul.addr %s151, 256
        %s153 = scalar_lea.vmem [#allocation2], %s152
        // Predicated region
        $region29: #{tpu_custom_call.1} parent=27 // pred_check
          %p154 = pneg %p41
        $region30: #{tpu_custom_call.1} parent=27 // pred_check_branch
          %156 = sbr.rel (%p154) target = $region32
        $region31: #{tpu_custom_call.1} parent=27 // pred_region
          %157 = dma.done %s150, 4096
        $region32: #{tpu_custom_call.1} parent=27 // pred_fallthru
          _
        // Predicated region
        $region33: #{tpu_custom_call.1} parent=27 // pred_check
          %p158 = pneg %p62
        $region34: #{tpu_custom_call.1} parent=27 // pred_check_branch
          %160 = sbr.rel (%p158) target = $region36
        $region35: #{tpu_custom_call.1} parent=27 // pred_region
          %161 = dma.done [#allocation6], 4096
        $region36: #{tpu_custom_call.1} parent=27 // pred_fallthru
          _
        %s162 = sand.u32 %s28, 1
        %s163 = scalar_lea.sflag [#allocation3], %s162
        %s164 = sand.u32 %s28, 1
        %s165 = smul.addr %s164, 256
        %s166 = scalar_lea.vmem [#allocation2], %s165
        %p167 = pneg %p41
        %p168 = pneg %p38
        %p169 = pneg %p62
        %p170 = pneg %p59
        %p171 = pneg %p88
        %p172 = pneg %p85
        %s173 = sand.u32 %s75, 1
        %s174 = scalar_lea.sflag [#allocation4], %s173
        %s175 = sand.u32 %s75, 1
        %s176 = smul.addr %s175, 128
        %s177 = scalar_lea.vmem [#allocation7], %s176
        %s178 = smul.u32 16, %s20
        %s179 = smul.u32 16, %s20
        %v180 = vld [vmem:[%s153] sm:$0xff]
        %v181 = vld [vmem:[%s153 + $0x8] sm:$0xff]
        %v182 = vld [vmem:[%s153 + $0x10] sm:$0xff]
        %v183 = vld [vmem:[%s153 + $0x18] sm:$0xff]
        %v184 = vld [vmem:[%s153 + $0x20] sm:$0xff]
        %v185 = vld [vmem:[%s153 + $0x28] sm:$0xff]
        %v186 = vld [vmem:[%s153 + $0x30] sm:$0xff]
        %v187 = vld [vmem:[%s153 + $0x38] sm:$0xff]
        %v188 = vld [vmem:[%s153 + $0x40] sm:$0xff]
        %v189 = vld [vmem:[%s153 + $0x48] sm:$0xff]
        %v190 = vld [vmem:[%s153 + $0x50] sm:$0xff]
        %v191 = vld [vmem:[%s153 + $0x58] sm:$0xff]
        %v192 = vld [vmem:[%s153 + $0x60] sm:$0xff]
        %v193 = vld [vmem:[%s153 + $0x68] sm:$0xff]
        %v194 = vld [vmem:[%s153 + $0x70] sm:$0xff]
        %v195 = vld [vmem:[%s153 + $0x78] sm:$0xff]
        %v196 = vld [vmem:[%s153 + $0x80] sm:$0xff]
        %v197 = vld [vmem:[%s153 + $0x88] sm:$0xff]
        %v198 = vld [vmem:[%s153 + $0x90] sm:$0xff]
        %v199 = vld [vmem:[%s153 + $0x98] sm:$0xff]
        %v200 = vld [vmem:[%s153 + $0xa0] sm:$0xff]
        %v201 = vld [vmem:[%s153 + $0xa8] sm:$0xff]
        %v202 = vld [vmem:[%s153 + $0xb0] sm:$0xff]
        %v203 = vld [vmem:[%s153 + $0xb8] sm:$0xff]
        %v204 = vld [vmem:[%s153 + $0xc0] sm:$0xff]
        %v205 = vld [vmem:[%s153 + $0xc8] sm:$0xff]
        %v206 = vld [vmem:[%s153 + $0xd0] sm:$0xff]
        %v207 = vld [vmem:[%s153 + $0xd8] sm:$0xff]
        %v208 = vld [vmem:[%s153 + $0xe0] sm:$0xff]
        %v209 = vld [vmem:[%s153 + $0xe8] sm:$0xff]
        %v210 = vld [vmem:[%s153 + $0xf0] sm:$0xff]
        %v211 = vld [vmem:[%s153 + $0xf8] sm:$0xff]
        %v212 = vld [vmem:[#allocation5] sm:$0xff]
        %v213 = vld [vmem:[#allocation5 + $0x8] sm:$0xff]
        %v214 = vld [vmem:[#allocation5 + $0x10] sm:$0xff]
        %v215 = vld [vmem:[#allocation5 + $0x18] sm:$0xff]
        %v216 = vld [vmem:[#allocation5 + $0x20] sm:$0xff]
        %v217 = vld [vmem:[#allocation5 + $0x28] sm:$0xff]
        %v218 = vld [vmem:[#allocation5 + $0x30] sm:$0xff]
        %v219 = vld [vmem:[#allocation5 + $0x38] sm:$0xff]
        %v220 = vld [vmem:[#allocation5 + $0x40] sm:$0xff]
        %v221 = vld [vmem:[#allocation5 + $0x48] sm:$0xff]
        %v222 = vld [vmem:[#allocation5 + $0x50] sm:$0xff]
        %v223 = vld [vmem:[#allocation5 + $0x58] sm:$0xff]
        %v224 = vld [vmem:[#allocation5 + $0x60] sm:$0xff]
        %v225 = vld [vmem:[#allocation5 + $0x68] sm:$0xff]
        %v226 = vld [vmem:[#allocation5 + $0x70] sm:$0xff]
        %v227 = vld [vmem:[#allocation5 + $0x78] sm:$0xff]
        %v228 = vld [vmem:[#allocation5 + $0x80] sm:$0xff]
        %v229 = vld [vmem:[#allocation5 + $0x88] sm:$0xff]
        %v230 = vld [vmem:[#allocation5 + $0x90] sm:$0xff]
        %v231 = vld [vmem:[#allocation5 + $0x98] sm:$0xff]
        %v232 = vld [vmem:[#allocation5 + $0xa0] sm:$0xff]
        %v233 = vld [vmem:[#allocation5 + $0xa8] sm:$0xff]
        %v234 = vld [vmem:[#allocation5 + $0xb0] sm:$0xff]
        %v235 = vld [vmem:[#allocation5 + $0xb8] sm:$0xff]
        %v236 = vld [vmem:[#allocation5 + $0xc0] sm:$0xff]
        %v237 = vld [vmem:[#allocation5 + $0xc8] sm:$0xff]
        %v238 = vld [vmem:[#allocation5 + $0xd0] sm:$0xff]
        %v239 = vld [vmem:[#allocation5 + $0xd8] sm:$0xff]
        %v240 = vld [vmem:[#allocation5 + $0xe0] sm:$0xff]
        %v241 = vld [vmem:[#allocation5 + $0xe8] sm:$0xff]
        %v242 = vld [vmem:[#allocation5 + $0xf0] sm:$0xff]
        %v243 = vld [vmem:[#allocation5 + $0xf8] sm:$0xff]
        %244 = vmatprep.subr.mxu0 0.0
        %245 = vmatpush1.msra.mxu0 %v212
        %246 = vmatprep.subr.mxu0 0.0
        %247 = vmatpush1.msra.mxu0 %v213
        %248 = vmatprep.subr.mxu0 0.0
        %249 = vmatpush1.msra.mxu0 %v214
        %250 = vmatprep.subr.mxu0 0.0
        %251 = vmatpush1.msra.mxu0 %v215
        %252 = vmatprep.subr.mxu0 0.0
        %253 = vmatpush1.msra.mxu0 %v216
        %254 = vmatprep.subr.mxu0 0.0
        %255 = vmatpush1.msra.mxu0 %v217
        %256 = vmatprep.subr.mxu0 0.0
        %257 = vmatpush1.msra.mxu0 %v218
        %258 = vmatprep.subr.mxu0 0.0
        %259 = vmatpush1.msra.mxu0 %v219
        %260 = vmatprep.subr.mxu0 0.0
        %261 = vmatpush1.msra.mxu0 %v220
        %262 = vmatprep.subr.mxu0 0.0
        %263 = vmatpush1.msra.mxu0 %v221
        %264 = vmatprep.subr.mxu0 0.0
        %265 = vmatpush1.msra.mxu0 %v222
        %266 = vmatprep.subr.mxu0 0.0
        %267 = vmatpush1.msra.mxu0 %v223
        %268 = vmatprep.subr.mxu0 0.0
        %269 = vmatpush1.msra.mxu0 %v224
        %270 = vmatprep.subr.mxu0 0.0
        %271 = vmatpush1.msra.mxu0 %v225
        %272 = vmatprep.subr.mxu0 0.0
        %273 = vmatpush1.msra.mxu0 %v226
        %274 = vmatprep.subr.mxu0 0.0
        %275 = vmatpush1.msra.mxu0 %v227
        %276 = vmatprep.subr.mxu0 0.0
        %277 = vmatpush1.msra.mxu0 %v228
        %278 = vmatprep.subr.mxu0 0.0
        %279 = vmatpush1.msra.mxu0 %v229
        %280 = vmatprep.subr.mxu0 0.0
        %281 = vmatpush1.msra.mxu0 %v230
        %282 = vmatprep.subr.mxu0 0.0
        %283 = vmatpush1.msra.mxu0 %v231
        %284 = vmatprep.subr.mxu0 0.0
        %285 = vmatpush1.msra.mxu0 %v232
        %286 = vmatprep.subr.mxu0 0.0
        %287 = vmatpush1.msra.mxu0 %v233
        %288 = vmatprep.subr.mxu0 0.0
        %289 = vmatpush1.msra.mxu0 %v234
        %290 = vmatprep.subr.mxu0 0.0
        %291 = vmatpush1.msra.mxu0 %v235
        %292 = vmatprep.subr.mxu0 0.0
        %293 = vmatpush1.msra.mxu0 %v236
        %294 = vmatprep.subr.mxu0 0.0
        %295 = vmatpush1.msra.mxu0 %v237
        %296 = vmatprep.subr.mxu0 0.0
        %297 = vmatpush1.msra.mxu0 %v238
        %298 = vmatprep.subr.mxu0 0.0
        %299 = vmatpush1.msra.mxu0 %v239
        %300 = vmatprep.subr.mxu0 0.0
        %301 = vmatpush1.msra.mxu0 %v240
        %302 = vmatprep.subr.mxu0 0.0
        %303 = vmatpush1.msra.mxu0 %v241
        %304 = vmatprep.subr.mxu0 0.0
        %305 = vmatpush1.msra.mxu0 %v242
        %306 = vmatprep.subr.mxu0 0.0
        %307 = vmatpush1.msra.mxu0 %v243
        %308 = vmatprep.mubr.f32.mxu0 %v181
        %309 = vmatmul.mubr.f32.gmra.mrb[0].mxu0 %v180
        %v310 = vpop.f32.mrb[0].mxu0
        %v311 = vadd.f32 0.0, %v310
        %v312 = vpop.f32.mrb[0].mxu0
        %313 = vmatprep.mubr.f32.mxu0 %v183
        %314 = vmatmul.mubr.f32.gmra.mrb[0].mxu0 %v182
        %v315 = vpop.f32.mrb[0].mxu0
        %v316 = vadd.f32 0.0, %v315
        %v317 = vpop.f32.mrb[0].mxu0
        %318 = vmatprep.mubr.f32.mxu0 %v185
        %319 = vmatmul.mubr.f32.gmra.mrb[0].mxu0 %v184
        %v320 = vpop.f32.mrb[0].mxu0
        %v321 = vadd.f32 0.0, %v320
        %v322 = vpop.f32.mrb[0].mxu0
        %323 = vmatprep.mubr.f32.mxu0 %v187
        %324 = vmatmul.mubr.f32.gmra.mrb[0].mxu0 %v186
        %v325 = vpop.f32.mrb[0].mxu0
        %v326 = vadd.f32 0.0, %v325
        %v327 = vpop.f32.mrb[0].mxu0
        %328 = vmatprep.mubr.f32.mxu0 %v189
        %329 = vmatmul.mubr.f32.gmra.mrb[0].mxu0 %v188
        %v330 = vpop.f32.mrb[0].mxu0
        %v331 = vadd.f32 0.0, %v330
        %v332 = vpop.f32.mrb[0].mxu0
        %333 = vmatprep.mubr.f32.mxu0 %v191
        %334 = vmatmul.mubr.f32.gmra.mrb[0].mxu0 %v190
        %v335 = vpop.f32.mrb[0].mxu0
        %v336 = vadd.f32 0.0, %v335
        %v337 = vpop.f32.mrb[0].mxu0
        %338 = vmatprep.mubr.f32.mxu0 %v193
        %339 = vmatmul.mubr.f32.gmra.mrb[0].mxu0 %v192
        %v340 = vpop.f32.mrb[0].mxu0
        %v341 = vadd.f32 0.0, %v340
        %v342 = vpop.f32.mrb[0].mxu0
        %343 = vmatprep.mubr.f32.mxu0 %v195
        %344 = vmatmul.mubr.f32.gmra.mrb[0].mxu0 %v194
        %v345 = vpop.f32.mrb[0].mxu0
        %v346 = vadd.f32 0.0, %v345
        %v347 = vpop.f32.mrb[0].mxu0
        %348 = vmatprep.mubr.f32.mxu0 %v197
        %349 = vmatmul.mubr.f32.gmra.mrb[0].mxu0 %v196
        %v350 = vpop.f32.mrb[0].mxu0
        %v351 = vadd.f32 0.0, %v350
        %v352 = vpop.f32.mrb[0].mxu0
        %353 = vmatprep.mubr.f32.mxu0 %v199
        %354 = vmatmul.mubr.f32.gmra.mrb[0].mxu0 %v198
        %v355 = vpop.f32.mrb[0].mxu0
        %v356 = vadd.f32 0.0, %v355
        %v357 = vpop.f32.mrb[0].mxu0
        %358 = vmatprep.mubr.f32.mxu0 %v201
        %359 = vmatmul.mubr.f32.gmra.mrb[0].mxu0 %v200
        %v360 = vpop.f32.mrb[0].mxu0
        %v361 = vadd.f32 0.0, %v360
        %v362 = vpop.f32.mrb[0].mxu0
        %363 = vmatprep.mubr.f32.mxu0 %v203
        %364 = vmatmul.mubr.f32.gmra.mrb[0].mxu0 %v202
        %v365 = vpop.f32.mrb[0].mxu0
        %v366 = vadd.f32 0.0, %v365
        %v367 = vpop.f32.mrb[0].mxu0
        %368 = vmatprep.mubr.f32.mxu0 %v205
        %369 = vmatmul.mubr.f32.gmra.mrb[0].mxu0 %v204
        %v370 = vpop.f32.mrb[0].mxu0
        %v371 = vadd.f32 0.0, %v370
        %v372 = vpop.f32.mrb[0].mxu0
        %373 = vmatprep.mubr.f32.mxu0 %v207
        %374 = vmatmul.mubr.f32.gmra.mrb[0].mxu0 %v206
        %v375 = vpop.f32.mrb[0].mxu0
        %v376 = vadd.f32 0.0, %v375
        %v377 = vpop.f32.mrb[0].mxu0
        %378 = vmatprep.mubr.f32.mxu0 %v209
        %379 = vmatmul.mubr.f32.gmra.mrb[0].mxu0 %v208
        %v380 = vpop.f32.mrb[0].mxu0
        %v381 = vadd.f32 0.0, %v380
        %v382 = vpop.f32.mrb[0].mxu0
        %383 = vmatprep.mubr.f32.mxu0 %v211
        %384 = vmatmul.mubr.f32.gmra.mrb[0].mxu0 %v210
        %v385 = vpop.f32.mrb[0].mxu0
        %v386 = vadd.f32 0.0, %v385
        %v387 = vpop.f32.mrb[0].mxu0
        %388 = vdwg.mxu0
        %v389 = vmax.f32 %v311, 0.0
        %v390 = vmax.f32 %v316, 0.0
        %v391 = vmax.f32 %v321, 0.0
        %v392 = vmax.f32 %v326, 0.0
        %v393 = vmax.f32 %v331, 0.0
        %v394 = vmax.f32 %v336, 0.0
        %v395 = vmax.f32 %v341, 0.0
        %v396 = vmax.f32 %v346, 0.0
        %v397 = vmax.f32 %v351, 0.0
        %v398 = vmax.f32 %v356, 0.0
        %v399 = vmax.f32 %v361, 0.0
        %v400 = vmax.f32 %v366, 0.0
        %v401 = vmax.f32 %v371, 0.0
        %v402 = vmax.f32 %v376, 0.0
        %v403 = vmax.f32 %v381, 0.0
        %v404 = vmax.f32 %v386, 0.0
        %v405 = vmul.f32 %v389, %v389
        %v406 = vmul.f32 %v390, %v390
        %v407 = vmul.f32 %v391, %v391
        %v408 = vmul.f32 %v392, %v392
        %v409 = vmul.f32 %v393, %v393
        %v410 = vmul.f32 %v394, %v394
        %v411 = vmul.f32 %v395, %v395
        %v412 = vmul.f32 %v396, %v396
        %v413 = vmul.f32 %v397, %v397
        %v414 = vmul.f32 %v398, %v398
        %v415 = vmul.f32 %v399, %v399
        %v416 = vmul.f32 %v400, %v400
        %v417 = vmul.f32 %v401, %v401
        %v418 = vmul.f32 %v402, %v402
        %v419 = vmul.f32 %v403, %v403
        %v420 = vmul.f32 %v404, %v404
        %421 = vadd.xlane.f32.xlu0 %v405
        %v422 = vpop.xlane.xlu0 %421
        %423 = vadd.xlane.f32.xlu0 %v406
        %v424 = vpop.xlane.xlu0 %423
        %425 = vadd.xlane.f32.xlu0 %v407
        %v426 = vpop.xlane.xlu0 %425
        %427 = vadd.xlane.f32.xlu0 %v408
        %v428 = vpop.xlane.xlu0 %427
        %429 = vadd.xlane.f32.xlu0 %v409
        %v430 = vpop.xlane.xlu0 %429
        %431 = vadd.xlane.f32.xlu0 %v410
        %v432 = vpop.xlane.xlu0 %431
        %433 = vadd.xlane.f32.xlu0 %v411
        %v434 = vpop.xlane.xlu0 %433
        %435 = vadd.xlane.f32.xlu0 %v412
        %v436 = vpop.xlane.xlu0 %435
        %437 = vadd.xlane.f32.xlu0 %v413
        %v438 = vpop.xlane.xlu0 %437
        %439 = vadd.xlane.f32.xlu0 %v414
        %v440 = vpop.xlane.xlu0 %439
        %441 = vadd.xlane.f32.xlu0 %v415
        %v442 = vpop.xlane.xlu0 %441
        %443 = vadd.xlane.f32.xlu0 %v416
        %v444 = vpop.xlane.xlu0 %443
        %445 = vadd.xlane.f32.xlu0 %v417
        %v446 = vpop.xlane.xlu0 %445
        %447 = vadd.xlane.f32.xlu0 %v418
        %v448 = vpop.xlane.xlu0 %447
        %449 = vadd.xlane.f32.xlu0 %v419
        %v450 = vpop.xlane.xlu0 %449
        %451 = vadd.xlane.f32.xlu0 %v420
        %v452 = vpop.xlane.xlu0 %451
        %v453 = vmax.f32 %v422, 1e-24
        %v454 = vmax.f32 %v424, 1e-24
        %v455 = vmax.f32 %v426, 1e-24
        %v456 = vmax.f32 %v428, 1e-24
        %v457 = vmax.f32 %v430, 1e-24
        %v458 = vmax.f32 %v432, 1e-24
        %v459 = vmax.f32 %v434, 1e-24
        %v460 = vmax.f32 %v436, 1e-24
        %v461 = vmax.f32 %v438, 1e-24
        %v462 = vmax.f32 %v440, 1e-24
        %v463 = vmax.f32 %v442, 1e-24
        %v464 = vmax.f32 %v444, 1e-24
        %v465 = vmax.f32 %v446, 1e-24
        %v466 = vmax.f32 %v448, 1e-24
        %v467 = vmax.f32 %v450, 1e-24
        %v468 = vmax.f32 %v452, 1e-24
        %v469 = vrsqrt.pop %v453
        %v470 = vrsqrt.pop %v454
        %v471 = vrsqrt.pop %v455
        %v472 = vrsqrt.pop %v456
        %v473 = vrsqrt.pop %v457
        %v474 = vrsqrt.pop %v458
        %v475 = vrsqrt.pop %v459
        %v476 = vrsqrt.pop %v460
        %v477 = vrsqrt.pop %v461
        %v478 = vrsqrt.pop %v462
        %v479 = vrsqrt.pop %v463
        %v480 = vrsqrt.pop %v464
        %v481 = vrsqrt.pop %v465
        %v482 = vrsqrt.pop %v466
        %v483 = vrsqrt.pop %v467
        %v484 = vrsqrt.pop %v468
        %v485 = vmul.f32 %v389, %v469
        %v486 = vmul.f32 %v390, %v470
        %v487 = vmul.f32 %v391, %v471
        %v488 = vmul.f32 %v392, %v472
        %v489 = vmul.f32 %v393, %v473
        %v490 = vmul.f32 %v394, %v474
        %v491 = vmul.f32 %v395, %v475
        %v492 = vmul.f32 %v396, %v476
        %v493 = vmul.f32 %v397, %v477
        %v494 = vmul.f32 %v398, %v478
        %v495 = vmul.f32 %v399, %v479
        %v496 = vmul.f32 %v400, %v480
        %v497 = vmul.f32 %v401, %v481
        %v498 = vmul.f32 %v402, %v482
        %v499 = vmul.f32 %v403, %v483
        %v500 = vmul.f32 %v404, %v484
        %501 = vst [vmem:[%s177] sm:$0xff] %v485
        %502 = vst [vmem:[%s177 + $0x8] sm:$0xff] %v486
        %503 = vst [vmem:[%s177 + $0x10] sm:$0xff] %v487
        %504 = vst [vmem:[%s177 + $0x18] sm:$0xff] %v488
        %505 = vst [vmem:[%s177 + $0x20] sm:$0xff] %v489
        %506 = vst [vmem:[%s177 + $0x28] sm:$0xff] %v490
        %507 = vst [vmem:[%s177 + $0x30] sm:$0xff] %v491
        %508 = vst [vmem:[%s177 + $0x38] sm:$0xff] %v492
        %509 = vst [vmem:[%s177 + $0x40] sm:$0xff] %v493
        %510 = vst [vmem:[%s177 + $0x48] sm:$0xff] %v494
        %511 = vst [vmem:[%s177 + $0x50] sm:$0xff] %v495
        %512 = vst [vmem:[%s177 + $0x58] sm:$0xff] %v496
        %513 = vst [vmem:[%s177 + $0x60] sm:$0xff] %v497
        %514 = vst [vmem:[%s177 + $0x68] sm:$0xff] %v498
        %515 = vst [vmem:[%s177 + $0x70] sm:$0xff] %v499
        %516 = vst [vmem:[%s177 + $0x78] sm:$0xff] %v500
        %s517 = sand.u32 %s75, 1
        %s518 = scalar_lea.sflag [#allocation4], %s517
        %s519 = sand.u32 %s75, 1
        %s520 = smul.addr %s519, 128
        %s521 = scalar_lea.vmem [#allocation7], %s520
        // Predicated region
        $region37: #{tpu_custom_call.1} parent=27 // pred_check
          %p522 = pneg %p85
        $region38: #{tpu_custom_call.1} parent=27 // pred_check_branch
          %524 = sbr.rel (%p522) target = $region40
        $region39: #{tpu_custom_call.1} parent=27 // pred_region
          %s525 = smul.u32 16, %s20
          %s527 = ssub.s32 2048, 2048
          %528 = vsyncadd %s518, %s527
          %s529 = smul.addr %s525, 128
          %s530 = scalar_lea.hbm %s2, %s529
          %s531 = sshll.u32 %s521, 4
          %s532 = int_to_ptr.vmem [resolvable:$true] %s531
          %537 = dma.vmem_to_hbm [thread:$0]  %s532, 2048, %s530, %s518, 128, 128, 8
        $region40: #{tpu_custom_call.1} parent=27 // pred_fallthru
          _
      $region28: #{tpu_custom_call.1} parent=5 // pred_fallthru
        _
      %p538 = scmp.le.s32.totalorder 2, %s15
      // Predicated region
      $region41: #{tpu_custom_call.1} parent=5 // pred_check
        %p539 = pneg %p538
      $region42: #{tpu_custom_call.1} parent=5 // pred_check_branch
        %541 = sbr.rel (%p539) target = $region44
      $region43: #{tpu_custom_call.1} parent=5 // pred_region
        %s542 = ssub.s32 %s15, 2
        // Predicated region
        $region45: #{tpu_custom_call.1} parent=43 // pred_check
          %p543 = pneg %p91
        $region46: #{tpu_custom_call.1} parent=43 // pred_check_branch
          %545 = sbr.rel (%p543) target = $region48
        $region47: #{tpu_custom_call.1} parent=43 // pred_region
          %s546 = sand.u32 %s76, 1
          %s547 = scalar_lea.sflag [#allocation4], %s546
          %s548 = sand.u32 %s76, 1
          %s549 = smul.addr %s548, 128
          %s550 = scalar_lea.vmem [#allocation7], %s549
          %551 = dma.done %s547, 2048
        $region48: #{tpu_custom_call.1} parent=43 // pred_fallthru
          _
      $region44: #{tpu_custom_call.1} parent=5 // pred_fallthru
        _
    $region6: #{tpu_custom_call.1} parent=1 // loop_footer
      %s19 = sadd.s32 1, %s15
    $region7: #{tpu_custom_call.1} parent=1 // loop_footer_branch
      %14 = sbr.rel target = $region3
    $region8: #{tpu_custom_call.1} parent=1 // loop_exit
      _
    %552 = vsyncpa [#allocation3], 1
    %s553 = scalar_lea.sflag [#allocation3], 1
    %554 = vsyncpa %s553, 1
    %555 = vsyncpa [#allocation6], 1
    %556 = vsyncpa [#allocation4], 1
    %s557 = scalar_lea.sflag [#allocation4], 1
    %558 = vsyncpa %s557, 1

</llo_original>
